<compile_context>
chip_gen: v5e
topology: v5e:2x2
jax: 0.10.0
libtpu: 0.0.40
codegen_flags: <defaults>
</compile_context>

<pallas_src>
import math

import jax
import jax.numpy as jnp
from jax.experimental import pallas as pl
from jax.experimental.pallas import tpu as pltpu


_LANE = 128
_TARGET_BLOCK_BYTES = 4 * 1024 * 1024   # padded-VMEM bytes per block buffer
_MIN_BLOCK_BYTES = 1 * 1024 * 1024      # don't shrink blocks below this
_MIN_GRID_STEPS = 8                     # pipeline ramp + megacore balance
_MAX_UNROLL = 32                        # cap on in-kernel flip-axis unroll


def _round_up(x, m):
    return ((x + m - 1) // m) * m


def _sublane_tile(dtype):
    # Packed-dtype tile height: 8 rows f32, 16 bf16, 32 int8/fp8.
    itemsize = jnp.dtype(dtype).itemsize
    return max(8, 32 // max(1, itemsize))


def _divisors(n):
    out = set()
    d = 1
    while d * d <= n:
        if n % d == 0:
            out.add(d)
            out.add(n // d)
        d += 1
    return sorted(out)


def _make_kernel(a_blk, ndim):
    """Kernel body: copy the tile, reversing the a_blk flip-axis slices."""
    if a_blk == 1:
        def kernel(x_ref, o_ref):
            # The flip is realized entirely by the input index_map.
            o_ref[...] = x_ref[...]
        return kernel

    tail = (slice(None),) * (ndim - 2)

    def kernel(x_ref, o_ref):
        # Static-slice slab copies; the mirrored input block is reversed
        # in-place in VMEM (leading-dim reversal, plain copies).
        for i in range(a_blk):
            j = a_blk - 1 - i
            o_ref[(slice(None), slice(i, i + 1)) + tail] = (
                x_ref[(slice(None), slice(j, j + 1)) + tail])
    return kernel


def _flip_call(view, block, counts, a_blk, block_bytes):
    """Build the pallas_call for a (n, a[, s1, 128] | s) view with blocking."""
    ndim = view.ndim
    na = counts["a"]

    # Put the grid axis with the most blocks first (helps the v7x megacore
    # split; measured no-op on v5e/v6e).  All axes are independent.
    axes = ("n", "a", "s")
    order = sorted(axes, key=lambda ax: -counts[ax])
    pos = {ax: i for i, ax in enumerate(order)}
    grid = tuple(counts[ax] for ax in order)

    def _coords(g):
        return g[pos["n"]], g[pos["a"]], g[pos["s"]]

    def in_index(*g):
        gn, ga, gs = _coords(g)
        ga = (na - 1) - ga          # mirrored read realizes the flip
        return (gn, ga, gs, 0) if ndim == 4 else (gn, ga, gs)

    def out_index(*g):
        gn, ga, gs = _coords(g)
        return (gn, ga, gs, 0) if ndim == 4 else (gn, ga, gs)

    # in + out, double-buffered, plus slack; clamped to stay legal on every
    # generation (v5e scoped default is 16 MiB, v7x physical VMEM is 64 MiB).
    vmem_limit = int(min(max(32 << 20, 4 * block_bytes + (8 << 20)), 64 << 20))

    return pl.pallas_call(
        _make_kernel(a_blk, ndim),
        out_shape=jax.ShapeDtypeStruct(view.shape, view.dtype),
        grid=grid,
        in_specs=[pl.BlockSpec(block, in_index)],
        out_specs=pl.BlockSpec(block, out_index),
        compiler_params=pltpu.CompilerParams(
            dimension_semantics=("parallel",) * len(grid),
            vmem_limit_bytes=vmem_limit,
        ),
    )(view)


def _flip_middle_axis(x3):
    """Flip a (n, a, s) array along its middle axis with a Pallas kernel."""
    n, a, s = x3.shape
    itemsize = jnp.dtype(x3.dtype).itemsize
    st = _sublane_tile(x3.dtype)
    budget = _TARGET_BLOCK_BYTES

    if s % _LANE == 0 and s >= _LANE:
        # ---- Layout A: lane-dense 4D view (n, a, s//128, 128).  The flip
        # axis is outside the last two dims, so any a_blk divisor is legal.
        s1 = s // _LANE
        view = x3.reshape(n, a, s1, _LANE)

        def padded(nb, ab, sb):          # padded-VMEM bytes of one block
            return nb * ab * _round_up(sb, st) * _LANE * itemsize

        if padded(1, 1, s1) <= budget:
            s1_blk = s1
        else:
            s1_blk = max(st, (budget // (_LANE * itemsize * st)) * st)

        # Grow a_blk (contiguous a_blk*s HBM runs) only if the full trailing
        # dim is covered; divisors of `a` keep the flip blocking exact.
        a_blk = 1
        if s1_blk == s1:
            fit = [d for d in _divisors(a)
                   if d <= _MAX_UNROLL and padded(1, d, s1_blk) <= budget]
            if fit:
                a_blk = max(fit)

        n_blk = min(n, max(1, budget // padded(1, a_blk, s1_blk)))

        # Minimum grid length: shrink blocks (down to _MIN_BLOCK_BYTES) so the
        # pipeline has enough steps to hide ramp and feed both v7x cores.
        for _ in range(32):
            steps = pl.cdiv(n, n_blk) * (a // a_blk) * pl.cdiv(s1, s1_blk)
            if (steps >= _MIN_GRID_STEPS
                    or padded(n_blk, a_blk, s1_blk) <= _MIN_BLOCK_BYTES):
                break
            if n_blk > 1:
                n_blk = -(-n_blk // 2)
            elif a_blk > 1:
                a_blk = max(d for d in _divisors(a) if d < a_blk)
            elif s1_blk > st:
                s1_blk = max(st, _round_up(s1_blk // 2, st))
            else:
                break

        block = (n_blk, a_blk, s1_blk, _LANE)
        counts = {"n": pl.cdiv(n, n_blk), "a": a // a_blk,
                  "s": pl.cdiv(s1, s1_blk)}
        y = _flip_call(view, block, counts, a_blk,
                       padded(n_blk, a_blk, s1_blk))
        return y.reshape(n, a, s)

    # ---- Layout B (s not a multiple of 128): 3D view (n, a, s); the block
    # always covers the full trailing dim (block dim == array dim is legal),
    # and a_blk is a divisor of `a` that is a multiple of the sublane tile (or
    # `a` itself) so the block's second-minor dim is legal.  Budgeting uses
    # padded bytes, so lane padding of small s cannot blow past the VMEM limit.
    lanes = _round_up(s, _LANE)

    def padded(nb, ab):
        return nb * _round_up(ab, st) * lanes * itemsize

    cand = [d for d in _divisors(a) if d % st == 0 or d == a]
    fit = [d for d in cand if d <= _MAX_UNROLL and padded(1, d) <= budget]
    # If nothing fits (e.g. `a` prime and > unroll cap), the only legal choice
    # is the smallest candidate; the adaptive vmem_limit keeps it compiling.
    a_blk = max(fit) if fit else min(cand)
    n_blk = min(n, max(1, budget // padded(1, a_blk)))

    for _ in range(32):
        steps = pl.cdiv(n, n_blk) * (a // a_blk)
        if steps >= _MIN_GRID_STEPS or padded(n_blk, a_blk) <= _MIN_BLOCK_BYTES:
            break
        if n_blk > 1:
            n_blk = -(-n_blk // 2)
        else:
            smaller = [d for d in cand if d < a_blk]
            if not smaller:
                break
            a_blk = max(smaller)

    block = (n_blk, a_blk, s)
    counts = {"n": pl.cdiv(n, n_blk), "a": a // a_blk, "s": 1}
    return _flip_call(x3, block, counts, a_blk, padded(n_blk, a_blk))


def flip_pallas(x, axis=1):
    """jnp.flip(x, axis) implemented as a Pallas TPU copy kernel."""
    axis = axis % x.ndim
    if x.shape[axis] <= 1 or x.size == 0:
        return x
    shape = x.shape
    n = math.prod(shape[:axis])
    a = shape[axis]
    s = math.prod(shape[axis + 1:])
    y3 = _flip_middle_axis(x.reshape(n, a, s))
    return y3.reshape(shape)


class FlipPallas:
    """JAX/Pallas equivalent of the PyTorch Flip module."""

    def __init__(self, ratio=0.5, axis=1):
        self.ratio = ratio
        self.axis = axis

    def __call__(self, x, key):
        # Mirrors: if np.random.rand() > self.ratio: flip else identity.
        # (RNG stream differs from NumPy's; statistically equivalent.)
        u = jax.random.uniform(key, ())
        do_flip = u > self.ratio
        # Note: under jit the identity branch of cond may still copy x into
        # the result buffer; no Pallas kernel runs on that branch.
        return jax.lax.cond(
            do_flip,
            lambda t: flip_pallas(t, axis=self.axis),
            lambda t: t,
            x,
        )


if __name__ == "__main__":
    key = jax.random.PRNGKey(0)
    k_data, k_coin = jax.random.split(key)

    # Small NCHW input consistent with the module's usage.
    x = jax.random.normal(k_data, (2, 4, 16, 16), dtype=jnp.float32)

    # 1) Lane-dense layout (trailing H*W = 256 is a multiple of 128), axis=1.
    y = jax.block_until_ready(flip_pallas(x, axis=1))
    assert jnp.array_equal(y, jnp.flip(x, axis=1)), "layout-A mismatch"

    # 2) Fallback layout (trailing size 16 not a multiple of 128), axis=2.
    y2 = jax.block_until_ready(flip_pallas(x, axis=2))
    assert jnp.array_equal(y2, jnp.flip(x, axis=2)), "layout-B mismatch"

    # 3) Flip axis larger than the unroll cap: exercises the mirrored
    #    index_map plus the in-block reversal across multiple flip blocks.
    xb = jax.random.normal(k_data, (2, 64, 8, 16), dtype=jnp.float32)
    yb = jax.block_until_ready(flip_pallas(xb, axis=1))
    assert jnp.array_equal(yb, jnp.flip(xb, axis=1)), "blocked-flip mismatch"

    # 4) bf16 (dtype-dependent sublane tile).
    xh = x.astype(jnp.bfloat16)
    yh = jax.block_until_ready(flip_pallas(xh, axis=1))
    assert jnp.array_equal(yh, jnp.flip(xh, axis=1)), "bf16 mismatch"

    # Full module (coin flip resolved outside the kernel via lax.cond).
    module = FlipPallas(ratio=0.5, axis=1)
    out = jax.block_until_ready(module(x, k_coin))
    u = jax.random.uniform(k_coin, ())
    ref = jnp.where(u > 0.5, jnp.flip(x, axis=1), x)
    assert jnp.array_equal(out, ref), "mismatch vs reference flip"

    print("KERNEL_OK")
</pallas_src>

<mosaic_0001>
module attributes {stable_mosaic.version = 11 : i64} {
  func.func @kernel(%arg0: i32, %arg1: i32, %arg2: i32, %arg3: memref<2x4x2x128xf32, #tpu.memory_space<vmem>>, %arg4: memref<2x4x2x128xf32, #tpu.memory_space<vmem>>) attributes {dimension_semantics = [#tpu.dimension_semantics<parallel>, #tpu.dimension_semantics<parallel>, #tpu.dimension_semantics<parallel>], iteration_bounds = array<i64: 1, 1, 1>, scalar_prefetch = 0 : i64, scratch_operands = 0 : i64, tpu.core_type = #tpu.core_type<tc>, window_params = [{transform_indices = @transform_0, window_bounds = array<i64: 2, 4, 2, 128>}, {transform_indices = @transform_1, window_bounds = array<i64: 2, 4, 2, 128>}]} {
    %c0 = arith.constant 0 : index
    %c3 = arith.constant 3 : index
    %c0_0 = arith.constant 0 : index
    %c0_1 = arith.constant 0 : index
    %0 = vector.load %arg3[%c0, %c3, %c0_0, %c0_1] : memref<2x4x2x128xf32, #tpu.memory_space<vmem>>, vector<2x1x2x128xf32>
    %c0_2 = arith.constant 0 : index
    %c0_3 = arith.constant 0 : index
    %c0_4 = arith.constant 0 : index
    %c0_5 = arith.constant 0 : index
    %1 = vector.load %arg4[%c0_2, %c0_3, %c0_4, %c0_5] : memref<2x4x2x128xf32, #tpu.memory_space<vmem>>, vector<2x1x2x128xf32>
    tpu.vector_store %arg4[%c0_2, %c0_3, %c0_4, %c0_5], %0 {strides = array<i32>} : memref<2x4x2x128xf32, #tpu.memory_space<vmem>>, vector<2x1x2x128xf32>,
    %c0_6 = arith.constant 0 : index
    %c2 = arith.constant 2 : index
    %c0_7 = arith.constant 0 : index
    %c0_8 = arith.constant 0 : index
    %2 = vector.load %arg3[%c0_6, %c2, %c0_7, %c0_8] : memref<2x4x2x128xf32, #tpu.memory_space<vmem>>, vector<2x1x2x128xf32>
    %c0_9 = arith.constant 0 : index
    %c1 = arith.constant 1 : index
    %c0_10 = arith.constant 0 : index
    %c0_11 = arith.constant 0 : index
    %3 = vector.load %arg4[%c0_9, %c1, %c0_10, %c0_11] : memref<2x4x2x128xf32, #tpu.memory_space<vmem>>, vector<2x1x2x128xf32>
    tpu.vector_store %arg4[%c0_9, %c1, %c0_10, %c0_11], %2 {strides = array<i32>} : memref<2x4x2x128xf32, #tpu.memory_space<vmem>>, vector<2x1x2x128xf32>,
    %c0_12 = arith.constant 0 : index
    %c1_13 = arith.constant 1 : index
    %c0_14 = arith.constant 0 : index
    %c0_15 = arith.constant 0 : index
    %4 = vector.load %arg3[%c0_12, %c1_13, %c0_14, %c0_15] : memref<2x4x2x128xf32, #tpu.memory_space<vmem>>, vector<2x1x2x128xf32>
    %c0_16 = arith.constant 0 : index
    %c2_17 = arith.constant 2 : index
    %c0_18 = arith.constant 0 : index
    %c0_19 = arith.constant 0 : index
    %5 = vector.load %arg4[%c0_16, %c2_17, %c0_18, %c0_19] : memref<2x4x2x128xf32, #tpu.memory_space<vmem>>, vector<2x1x2x128xf32>
    tpu.vector_store %arg4[%c0_16, %c2_17, %c0_18, %c0_19], %4 {strides = array<i32>} : memref<2x4x2x128xf32, #tpu.memory_space<vmem>>, vector<2x1x2x128xf32>,
    %c0_20 = arith.constant 0 : index
    %c0_21 = arith.constant 0 : index
    %c0_22 = arith.constant 0 : index
    %c0_23 = arith.constant 0 : index
    %6 = vector.load %arg3[%c0_20, %c0_21, %c0_22, %c0_23] : memref<2x4x2x128xf32, #tpu.memory_space<vmem>>, vector<2x1x2x128xf32>
    %c0_24 = arith.constant 0 : index
    %c3_25 = arith.constant 3 : index
    %c0_26 = arith.constant 0 : index
    %c0_27 = arith.constant 0 : index
    %7 = vector.load %arg4[%c0_24, %c3_25, %c0_26, %c0_27] : memref<2x4x2x128xf32, #tpu.memory_space<vmem>>, vector<2x1x2x128xf32>
    tpu.vector_store %arg4[%c0_24, %c3_25, %c0_26, %c0_27], %6 {strides = array<i32>} : memref<2x4x2x128xf32, #tpu.memory_space<vmem>>, vector<2x1x2x128xf32>,
    return
  }
  func.func @transform_0(%arg0: i32, %arg1: i32, %arg2: i32) -> (i32, i32, i32, i32) {
    %c0_i32 = arith.constant 0 : i32
    %0 = arith.subi %c0_i32, %arg1 : i32
    %c0_i32_0 = arith.constant 0 : i32
    %c0_i32_1 = arith.constant 0 : i32
    return %arg0, %0, %arg2, %c0_i32_0 : i32, i32, i32, i32
  }
  func.func @transform_1(%arg0: i32, %arg1: i32, %arg2: i32) -> (i32, i32, i32, i32) {
    %c0_i32 = arith.constant 0 : i32
    %c0_i32_0 = arith.constant 0 : i32
    return %arg0, %arg1, %arg2, %c0_i32 : i32, i32, i32, i32
  }
}

</mosaic_0001>

<llo_original>
// kernel: tpu_custom_call.1
$region0: #{tpu_custom_call.1}
  #allocation0 [shape = 'u32[]', space=smem, size = 0x4, offset = 0x4, fixed_abs, tag = 'smem constant byte address 0x4 - core index']
  #allocation1 [shape = 'u32[72,128]{1,0:T(1,128)}', space=vmem, size = 0x9000, scoped, tag = 'internal scratch']
  %s0 = inlined_call_operand.hbm [shape: f32[2,4,2,128], index: 0, kind: input, shape index: {}]
  %s1 = inlined_call_operand.hbm [shape: f32[2,4,2,128], index: 1, kind: output, shape index: {}]
  %s2 = sld [smem:[#allocation0]]
  $region18: #{tpu_custom_call.1} parent=0
    _
  %s4 = ssub.s32 1, %s2
  %s5 = scalar_select 0, %s4, %s2
  $region1: #{tpu_custom_call.1} parent=0
    #allocation2 [shape = 'u8[8192]{0}', space=vmem, size = 0x2000, scoped, tag = 'input window, operand 0, single buffered']
    #allocation3 [shape = 's32[1]{0}', space=sflag, size = 0x4, scoped, tag = 'scoped memory for tpu_custom_call.1']
    #allocation4 [shape = 's32[1]{0}', space=sflag, size = 0x4, scoped, tag = 'scoped memory for tpu_custom_call.1']
    #allocation5 [shape = 'u8[8192]{0}', space=vmem, size = 0x2000, scoped, tag = 'output window, operand 0, single buffered']
    %6 = vsyncpa [#allocation3], 0
    %7 = vsyncpa [#allocation4], 0
    // Predicated region
    $region2: #{tpu_custom_call.1} parent=1 // pred_check
      _
    $region3: #{tpu_custom_call.1} parent=1 // pred_check_branch
      %9 = sbr.rel (0) target = $region5
    $region4: #{tpu_custom_call.1} parent=1 // pred_region
      %s10 = ssub.s32 0, 0
      %s11 = smul.u32 4, %s10
      %13 = vsyncadd [#allocation3], 0
      %s14 = smul.addr %s11, 2
      %s15 = scalar_lea.hbm %s0, %s14
      %s16 = sshll.u32 %s15, 4
      %s17 = int_to_ptr.hbm [resolvable:$true] %s16
      %s18 = sshll.u32 [#allocation2], 4
      %s19 = int_to_ptr.vmem [resolvable:$true] %s18
      %24 = dma.hbm_to_vmem [thread:$0]  %s17, 256, %s19, [#allocation3], 32, 32, 2
    $region5: #{tpu_custom_call.1} parent=1 // pred_fallthru
      _
    // Predicated region
    $region6: #{tpu_custom_call.1} parent=1 // pred_check
      _
    $region7: #{tpu_custom_call.1} parent=1 // pred_check_branch
      %26 = sbr.rel (0) target = $region9
    $region8: #{tpu_custom_call.1} parent=1 // pred_region
      %28 = dma.done [#allocation3], 256
    $region9: #{tpu_custom_call.1} parent=1 // pred_fallthru
      _
    %s29 = ssub.s32 0, 0
    %s30 = smul.u32 4, %s29
    %s31 = scalar_lea.vmem [#allocation2], 6
    %v32 = vld [vmem:[%s31] sm:$0x3]
    %v33 = vld [vmem:[%s31 + $0x8] sm:$0x3]
    %34 = vst [vmem:[#allocation5] sm:$0x3] %v32
    %35 = vst [vmem:[#allocation5 + $0x8] sm:$0x3] %v33
    %s36 = scalar_lea.vmem [#allocation2], 4
    %v37 = vld [vmem:[%s36] sm:$0x3]
    %v38 = vld [vmem:[%s36 + $0x8] sm:$0x3]
    %s39 = scalar_lea.vmem [#allocation5], 2
    %40 = vst [vmem:[%s39] sm:$0x3] %v37
    %41 = vst [vmem:[%s39 + $0x8] sm:$0x3] %v38
    %s42 = scalar_lea.vmem [#allocation2], 2
    %v43 = vld [vmem:[%s42] sm:$0x3]
    %v44 = vld [vmem:[%s42 + $0x8] sm:$0x3]
    %s45 = scalar_lea.vmem [#allocation5], 4
    %46 = vst [vmem:[%s45] sm:$0x3] %v43
    %47 = vst [vmem:[%s45 + $0x8] sm:$0x3] %v44
    %v48 = vld [vmem:[#allocation2] sm:$0x3]
    %v49 = vld [vmem:[#allocation2 + $0x8] sm:$0x3]
    %s50 = scalar_lea.vmem [#allocation5], 6
    %51 = vst [vmem:[%s50] sm:$0x3] %v48
    %52 = vst [vmem:[%s50 + $0x8] sm:$0x3] %v49
    // Predicated region
    $region10: #{tpu_custom_call.1} parent=1 // pred_check
      _
    $region11: #{tpu_custom_call.1} parent=1 // pred_check_branch
      %54 = sbr.rel (0) target = $region13
    $region12: #{tpu_custom_call.1} parent=1 // pred_region
      %56 = vsyncadd [#allocation4], 0
      %s57 = sshll.u32 [#allocation5], 4
      %s58 = int_to_ptr.vmem [resolvable:$true] %s57
      %s59 = sshll.u32 %s1, 4
      %s60 = int_to_ptr.hbm [resolvable:$true] %s59
      %65 = dma.vmem_to_hbm [thread:$0]  %s58, 256, %s60, [#allocation4], 32, 32, 2
    $region13: #{tpu_custom_call.1} parent=1 // pred_fallthru
      _
    // Predicated region
    $region14: #{tpu_custom_call.1} parent=1 // pred_check
      _
    $region15: #{tpu_custom_call.1} parent=1 // pred_check_branch
      %67 = sbr.rel (0) target = $region17
    $region16: #{tpu_custom_call.1} parent=1 // pred_region
      %69 = dma.done [#allocation4], 256
    $region17: #{tpu_custom_call.1} parent=1 // pred_fallthru
      _
    %70 = vsyncpa [#allocation3], 1
    %71 = vsyncpa [#allocation4], 1

</llo_original>
